<compile_context>
chip_gen: v5e
topology: v5e:2x2
jax: 0.10.0
libtpu: 0.0.40
codegen_flags: <defaults>
</compile_context>

<pallas_src>
import functools

import jax
import jax.numpy as jnp
from jax.experimental import pallas as pl
from jax.experimental.pallas import tpu as pltpu

# ---- static module configuration (baked into the kernel at trace time) ----
HIDDEN_SIZE = 32
NORMALIZE_SPEECH = True      # exercises the LayerNorm path inside the kernel
TEXT_RESIDUAL = True
DROPOUT_SPEECH = 0.0         # p=0.0 -> Dropout1d is identity (eval / default)
LN_EPS = 1e-5
LANE = 128                   # TPU lane width
PACK = LANE // HIDDEN_SIZE   # 4 tokens packed per 128-lane row
# TODO(synk): stochastic Dropout1d (training-time channel dropout) is not implemented;
# with p=0.0 / eval mode it is an exact identity, matching the torch module.
# TODO(synk): lane packing assumes 128 % hidden_size == 0 (true for H=32).


def _round_up(x, m):
    return ((x + m - 1) // m) * m


def _gated_fusion_kernel(t_ref, s_ref, ln_ref, w_ref, gamma_ref, beta_ref, o_ref,
                         *, normalize_speech, text_residual):
    f32, bf16 = jnp.float32, jnp.bfloat16
    t_in = t_ref[...]                       # (tile, 128) native dtype
    s_in = s_ref[...]

    if normalize_speech:
        # One full-width bf16 MXU pass: [s | s*s] @ blockdiag(M, M) -> [mean | E[s^2]],
        # each already broadcast across the 32 lanes of its packed token.
        s_bf = s_in.astype(bf16)
        stats_in = jnp.concatenate([s_bf, s_bf * s_bf], axis=-1)          # (tile, 256)
        stats = jnp.dot(stats_in, ln_ref[...], preferred_element_type=f32)
        mean = stats[:, :LANE]
        # var = E[s^2] - mean^2: mild cancellation risk for large-mean inputs;
        # acceptable for LayerNorm over 32 elements.
        var = stats[:, LANE:] - mean * mean
        inv = jax.lax.rsqrt(var + LN_EPS)
        s_f = (s_in.astype(f32) - mean) * inv * gamma_ref[...] + beta_ref[...]
    else:
        s_f = s_in.astype(f32)

    # One full-width bf16 MXU pass for both gate logits:
    #   [t | s_norm] @ W_block -> [logit0 | logit1] (broadcast per packed token).
    gate_in = jnp.concatenate([t_in.astype(bf16), s_f.astype(bf16)], axis=-1)
    logits = jnp.dot(gate_in, w_ref[...], preferred_element_type=f32)
    # sigmoid(x) = 1 / (1 + exp(-x)) with an approximate EUP reciprocal (no exact
    # divide); exp(-x) overflow for very negative x still yields gate -> 0 correctly.
    gate0 = pl.reciprocal(1.0 + jnp.exp(-logits[:, :LANE]), approx=True)
    gate1 = pl.reciprocal(1.0 + jnp.exp(-logits[:, LANE:]), approx=True)

    if jnp.dtype(o_ref.dtype) == jnp.dtype(bf16):
        # bf16 elementwise epilogue (bf16 VPU on v6e/v7x; halves vreg pressure).
        out = gate0.astype(bf16) * t_in + gate1.astype(bf16) * s_f.astype(bf16)
        if text_residual:
            out = out + t_in
        o_ref[...] = out
    else:
        t_f = t_in.astype(f32)
        out = gate0 * t_f + gate1 * s_f
        if text_residual:
            out = out + t_f
        o_ref[...] = out.astype(o_ref.dtype)


def gated_fusion(text_embeds, speech_embeds, gate_weight, ln_gamma, ln_beta,
                 *, normalize_speech=NORMALIZE_SPEECH,
                 text_residual=TEXT_RESIDUAL, tile_rows=1024):
    """text_embeds, speech_embeds: (B, T, H); gate_weight: (2, 2H) (torch layout).

    bf16 I/O is the recommended calling convention (the kernel is bandwidth-limited
    on v5e and memory traffic halves); LN stats / logits are accumulated in f32.
    """
    B, T, H = text_embeds.shape
    assert H == HIDDEN_SIZE and LANE % H == 0, "kernel baked for hidden_size=32"
    pack = LANE // H
    N = B * T

    t2d = text_embeds.reshape(N, H)
    s2d = speech_embeds.reshape(N, H)
    rem = N % pack
    if rem:
        # Only pad to the next multiple of pack (<= 3 tokens). The tile/grid
        # remainder is handled by Pallas partial-block clipping, not padding.
        pad = pack - rem
        t2d = jnp.pad(t2d, ((0, pad), (0, 0)))
        s2d = jnp.pad(s2d, ((0, pad), (0, 0)))
    n_al = N + (pack - rem) % pack
    rows = n_al // pack
    t_packed = t2d.reshape(rows, LANE)      # free contiguous reshape
    s_packed = s2d.reshape(rows, LANE)

    # Tile sizing: multiple of 8 sublanes, capped so (a) double-buffered VMEM stays
    # small (v7x: 64 MiB physical / 32 MiB scoped default) and (b) the grid has >= 2
    # tiles whenever possible so dimension_semantics=("parallel",) can shard across
    # v7x's two TensorCores.  >=512-row tiles are already ~85% of the HBM roofline.
    if rows < 8:
        tile_rows = rows                    # full-array block for tiny inputs
    else:
        tile_rows = max(8, min(tile_rows, _round_up(pl.cdiv(rows, 2), 8)))
    num_tiles = pl.cdiv(rows, tile_rows)

    # ---- constant block matrices (segment = one packed token of 32 lanes) ----
    f32, bf16 = jnp.float32, jnp.bfloat16
    seg = jnp.arange(LANE) // H
    same_seg = (seg[:, None] == seg[None, :]).astype(f32)            # (128,128)
    m_mean = same_seg / H                                            # 1/32 exact in bf16
    zeros = jnp.zeros((LANE, LANE), f32)
    ln_block = jnp.concatenate(
        [jnp.concatenate([m_mean, zeros], axis=1),
         jnp.concatenate([zeros, m_mean], axis=1)], axis=0).astype(bf16)   # (256,256)

    # nn.Linear(2H, 2, bias=False): logits = x @ W.T, expanded to a (256,256) block
    # matrix so one matmul of [t | s] produces [logit0 | logit1] broadcast over each
    # packed token's 32 lanes.
    w = gate_weight.astype(f32)                                      # (2, 2H)
    lane_in_seg = jnp.arange(LANE) % H
    a_t0 = same_seg * w[0, lane_in_seg][:, None]
    a_t1 = same_seg * w[1, lane_in_seg][:, None]
    a_s0 = same_seg * w[0, H + lane_in_seg][:, None]
    a_s1 = same_seg * w[1, H + lane_in_seg][:, None]
    w_block = jnp.concatenate(
        [jnp.concatenate([a_t0, a_t1], axis=1),
         jnp.concatenate([a_s0, a_s1], axis=1)], axis=0).astype(bf16)      # (256,256)

    gamma = jnp.tile(ln_gamma.astype(f32), pack).reshape(1, LANE)
    beta = jnp.tile(ln_beta.astype(f32), pack).reshape(1, LANE)

    kernel = functools.partial(_gated_fusion_kernel,
                               normalize_speech=normalize_speech,
                               text_residual=text_residual)

    itemsize = jnp.dtype(text_embeds.dtype).itemsize
    cost = pl.CostEstimate(
        flops=rows * (2 * 2 * (2 * LANE) * (2 * LANE) + 24 * LANE),
        transcendentals=5 * rows * LANE,          # 2 exp + 2 approx recip + rsqrt
        bytes_accessed=3 * rows * LANE * itemsize + 2 * (2 * LANE) * (2 * LANE) * 2,
    )

    const_spec = pl.BlockSpec((2 * LANE, 2 * LANE), lambda i: (0, 0))
    row_spec = pl.BlockSpec((1, LANE), lambda i: (0, 0))

    out_packed = pl.pallas_call(
        kernel,
        out_shape=jax.ShapeDtypeStruct((rows, LANE), text_embeds.dtype),
        grid_spec=pltpu.PrefetchScalarGridSpec(
            num_scalar_prefetch=0,
            grid=(num_tiles,),
            in_specs=[
                pl.BlockSpec((tile_rows, LANE), lambda i: (i, 0)),   # text tile
                pl.BlockSpec((tile_rows, LANE), lambda i: (i, 0)),   # speech tile
                const_spec,                                          # LN blockdiag(M,M)
                const_spec,                                          # gate W block
                row_spec,                                            # LN gamma (tiled)
                row_spec,                                            # LN beta  (tiled)
            ],
            out_specs=pl.BlockSpec((tile_rows, LANE), lambda i: (i, 0)),
        ),
        compiler_params=pltpu.CompilerParams(
            dimension_semantics=("parallel",)),
        cost_estimate=cost,
    )(t_packed, s_packed, ln_block, w_block, gamma, beta)

    return out_packed.reshape(n_al, H)[:N].reshape(B, T, H)


def _reference(text_embeds, speech_embeds, gate_weight, ln_gamma, ln_beta,
               *, normalize_speech=NORMALIZE_SPEECH,
               text_residual=TEXT_RESIDUAL):
    t = text_embeds.astype(jnp.float32)
    s = speech_embeds.astype(jnp.float32)
    if normalize_speech:
        mean = jnp.mean(s, axis=-1, keepdims=True)
        var = jnp.mean(jnp.square(s - mean), axis=-1, keepdims=True)
        s = (s - mean) * jax.lax.rsqrt(var + LN_EPS) * ln_gamma + ln_beta
    cat = jnp.concatenate([t, s], axis=-1)
    gate = jax.nn.sigmoid(cat @ gate_weight.T.astype(jnp.float32))
    out = gate[..., 0:1] * t + gate[..., 1:2] * s
    if text_residual:
        out = out + t
    return out.astype(text_embeds.dtype)


if __name__ == "__main__":
    H = HIDDEN_SIZE
    key = jax.random.PRNGKey(0)
    ks = jax.random.split(key, 10)

    # Parameters (shapes from __init__):
    #   gate = nn.Linear(2H, 2, bias=False)  -> weight (2, 2H)
    #   layer_norm_speech = nn.LayerNorm(H)  -> gamma (H,), beta (H,)
    bound = 1.0 / jnp.sqrt(2.0 * H)
    gate_weight = jax.random.uniform(ks[0], (2, 2 * H), minval=-bound, maxval=bound,
                                     dtype=jnp.float32)
    ln_gamma = 1.0 + 0.1 * jax.random.normal(ks[1], (H,), dtype=jnp.float32)
    ln_beta = 0.1 * jax.random.normal(ks[2], (H,), dtype=jnp.float32)

    # MXU operands are explicitly bf16 (single-pass) and sigmoid uses the approx EUP
    # reciprocal, so tolerances vs the pure-f32 reference reflect bf16 matmul precision.
    TOL = dict(atol=6e-2, rtol=6e-2)

    # (1) small aligned shape
    B, T = 2, 8
    t1 = jax.random.normal(ks[3], (B, T, H), dtype=jnp.float32)
    s1 = jax.random.normal(ks[4], (B, T, H), dtype=jnp.float32)
    out1 = jax.block_until_ready(gated_fusion(t1, s1, gate_weight, ln_gamma, ln_beta))
    ref1 = _reference(t1, s1, gate_weight, ln_gamma, ln_beta)
    assert out1.shape == (B, T, H)
    assert jnp.allclose(out1, ref1, **TOL), "mismatch vs reference (aligned)"

    # (2) token count not a multiple of pack=4 -> 1-token pad + partial last block
    B2, T2 = 3, 13
    t2 = jax.random.normal(ks[5], (B2, T2, H), dtype=jnp.float32)
    s2 = jax.random.normal(ks[6], (B2, T2, H), dtype=jnp.float32)
    out2 = jax.block_until_ready(gated_fusion(t2, s2, gate_weight, ln_gamma, ln_beta))
    ref2 = _reference(t2, s2, gate_weight, ln_gamma, ln_beta)
    assert jnp.allclose(out2, ref2, **TOL), "mismatch vs reference (unaligned tail)"

    # (3) medium shape -> 2-tile grid with a Pallas-clipped partial last block
    B3, T3 = 4, 500
    t3 = jax.random.normal(ks[7], (B3, T3, H), dtype=jnp.float32)
    s3 = jax.random.normal(ks[8], (B3, T3, H), dtype=jnp.float32)
    out3 = jax.block_until_ready(gated_fusion(t3, s3, gate_weight, ln_gamma, ln_beta))
    ref3 = _reference(t3, s3, gate_weight, ln_gamma, ln_beta)
    assert jnp.allclose(out3, ref3, **TOL), "mismatch vs reference (multi-tile)"

    # (4) bf16 I/O (recommended calling convention: halves HBM traffic)
    out4 = jax.block_until_ready(
        gated_fusion(t1.astype(jnp.bfloat16), s1.astype(jnp.bfloat16),
                     gate_weight, ln_gamma, ln_beta))
    ref4 = _reference(t1.astype(jnp.bfloat16), s1.astype(jnp.bfloat16),
                      gate_weight, ln_gamma, ln_beta)
    assert out4.dtype == jnp.bfloat16
    assert jnp.allclose(out4.astype(jnp.float32), ref4.astype(jnp.float32),
                        **TOL), "mismatch vs reference (bf16 I/O)"

    print("KERNEL_OK")
</pallas_src>

<mosaic_0001>
module attributes {stable_mosaic.version = 11 : i64} {
  func.func @_gated_fusion_kernel(%arg0: i32, %arg1: memref<4x128xf32, #tpu.memory_space<vmem>>, %arg2: memref<4x128xf32, #tpu.memory_space<vmem>>, %arg3: memref<256x256xbf16, #tpu.memory_space<vmem>>, %arg4: memref<256x256xbf16, #tpu.memory_space<vmem>>, %arg5: memref<1x128xf32, #tpu.memory_space<vmem>>, %arg6: memref<1x128xf32, #tpu.memory_space<vmem>>, %arg7: memref<4x128xf32, #tpu.memory_space<vmem>>) attributes {dimension_semantics = [#tpu.dimension_semantics<parallel>], iteration_bounds = array<i64: 1>, scalar_prefetch = 0 : i64, scratch_operands = 0 : i64, tpu.core_type = #tpu.core_type<tc>, window_params = [{transform_indices = @transform_0, window_bounds = array<i64: 4, 128>}, {transform_indices = @transform_1, window_bounds = array<i64: 4, 128>}, {pipeline_mode = #tpu.pipeline_mode<synchronous>, transform_indices = @transform_2, window_bounds = array<i64: 256, 256>}, {pipeline_mode = #tpu.pipeline_mode<synchronous>, transform_indices = @transform_3, window_bounds = array<i64: 256, 256>}, {pipeline_mode = #tpu.pipeline_mode<synchronous>, transform_indices = @transform_4, window_bounds = array<i64: 1, 128>}, {pipeline_mode = #tpu.pipeline_mode<synchronous>, transform_indices = @transform_5, window_bounds = array<i64: 1, 128>}, {transform_indices = @transform_6, window_bounds = array<i64: 4, 128>}]} {
    %c0 = arith.constant 0 : index
    %c0_0 = arith.constant 0 : index
    %0 = vector.load %arg1[%c0, %c0_0] : memref<4x128xf32, #tpu.memory_space<vmem>>, vector<4x128xf32>
    %c0_1 = arith.constant 0 : index
    %c0_2 = arith.constant 0 : index
    %1 = vector.load %arg2[%c0_1, %c0_2] : memref<4x128xf32, #tpu.memory_space<vmem>>, vector<4x128xf32>
    %2 = arith.truncf %1 : vector<4x128xf32> to vector<4x128xbf16>
    %3 = arith.mulf %2, %2 : vector<4x128xbf16>
    %4 = tpu.concatenate %2, %3 in 1 : vector<4x128xbf16>, vector<4x128xbf16> -> vector<4x256xbf16>
    %c0_3 = arith.constant 0 : index
    %c0_4 = arith.constant 0 : index
    %5 = vector.load %arg3[%c0_3, %c0_4] : memref<256x256xbf16, #tpu.memory_space<vmem>>, vector<256x256xbf16>
    %cst = arith.constant dense<0.000000e+00> : vector<4x256xf32>
    %6 = tpu.matmul %4, %5, %cst {dimension_numbers = #tpu.dot_dimension_numbers<[1], [0], [0], [1], [0, 0, 1, 1], [], []>} : vector<4x256xbf16>, vector<256x256xbf16>, vector<4x256xf32> -> vector<4x256xf32>
    %7 = vector.extract_strided_slice %6 {offsets = [0, 0], sizes = [4, 128], strides = [1, 1]} : vector<4x256xf32> to vector<4x128xf32>
    %8 = vector.extract_strided_slice %6 {offsets = [0, 128], sizes = [4, 128], strides = [1, 1]} : vector<4x256xf32> to vector<4x128xf32>
    %9 = arith.mulf %7, %7 : vector<4x128xf32>
    %10 = arith.subf %8, %9 : vector<4x128xf32>
    %cst_5 = arith.constant 9.99999974E-6 : f32
    %11 = vector.broadcast %cst_5 : f32 to vector<4x128xf32>
    %12 = arith.addf %10, %11 : vector<4x128xf32>
    %13 = math.rsqrt %12 : vector<4x128xf32>
    %14 = arith.subf %1, %7 : vector<4x128xf32>
    %15 = arith.mulf %14, %13 : vector<4x128xf32>
    %c0_6 = arith.constant 0 : index
    %c0_7 = arith.constant 0 : index
    %16 = vector.load %arg5[%c0_6, %c0_7] : memref<1x128xf32, #tpu.memory_space<vmem>>, vector<1x128xf32>
    %17 = vector.broadcast %16 : vector<1x128xf32> to vector<4x128xf32>
    %18 = arith.mulf %15, %17 : vector<4x128xf32>
    %c0_8 = arith.constant 0 : index
    %c0_9 = arith.constant 0 : index
    %19 = vector.load %arg6[%c0_8, %c0_9] : memref<1x128xf32, #tpu.memory_space<vmem>>, vector<1x128xf32>
    %20 = vector.broadcast %19 : vector<1x128xf32> to vector<4x128xf32>
    %21 = arith.addf %18, %20 : vector<4x128xf32>
    %22 = arith.truncf %0 : vector<4x128xf32> to vector<4x128xbf16>
    %23 = arith.truncf %21 : vector<4x128xf32> to vector<4x128xbf16>
    %24 = tpu.concatenate %22, %23 in 1 : vector<4x128xbf16>, vector<4x128xbf16> -> vector<4x256xbf16>
    %c0_10 = arith.constant 0 : index
    %c0_11 = arith.constant 0 : index
    %25 = vector.load %arg4[%c0_10, %c0_11] : memref<256x256xbf16, #tpu.memory_space<vmem>>, vector<256x256xbf16>
    %cst_12 = arith.constant dense<0.000000e+00> : vector<4x256xf32>
    %26 = tpu.matmul %24, %25, %cst_12 {dimension_numbers = #tpu.dot_dimension_numbers<[1], [0], [0], [1], [0, 0, 1, 1], [], []>} : vector<4x256xbf16>, vector<256x256xbf16>, vector<4x256xf32> -> vector<4x256xf32>
    %27 = vector.extract_strided_slice %26 {offsets = [0, 0], sizes = [4, 128], strides = [1, 1]} : vector<4x256xf32> to vector<4x128xf32>
    %cst_13 = arith.constant 0.000000e+00 : f32
    %28 = vector.broadcast %cst_13 : f32 to vector<4x128xf32>
    %29 = arith.subf %28, %27 : vector<4x128xf32>
    %30 = math.exp %29 : vector<4x128xf32>
    %cst_14 = arith.constant 1.000000e+00 : f32
    %31 = vector.broadcast %cst_14 : f32 to vector<4x128xf32>
    %32 = arith.addf %31, %30 : vector<4x128xf32>
    %33 = tpu.reciprocal %32 {approx = true} : vector<4x128xf32> -> vector<4x128xf32>
    %34 = vector.extract_strided_slice %26 {offsets = [0, 128], sizes = [4, 128], strides = [1, 1]} : vector<4x256xf32> to vector<4x128xf32>
    %cst_15 = arith.constant 0.000000e+00 : f32
    %35 = vector.broadcast %cst_15 : f32 to vector<4x128xf32>
    %36 = arith.subf %35, %34 : vector<4x128xf32>
    %37 = math.exp %36 : vector<4x128xf32>
    %cst_16 = arith.constant 1.000000e+00 : f32
    %38 = vector.broadcast %cst_16 : f32 to vector<4x128xf32>
    %39 = arith.addf %38, %37 : vector<4x128xf32>
    %40 = tpu.reciprocal %39 {approx = true} : vector<4x128xf32> -> vector<4x128xf32>
    %41 = arith.mulf %33, %0 : vector<4x128xf32>
    %42 = arith.mulf %40, %21 : vector<4x128xf32>
    %43 = arith.addf %41, %42 : vector<4x128xf32>
    %44 = arith.addf %43, %0 : vector<4x128xf32>
    %c0_17 = arith.constant 0 : index
    %c0_18 = arith.constant 0 : index
    %45 = vector.load %arg7[%c0_17, %c0_18] : memref<4x128xf32, #tpu.memory_space<vmem>>, vector<4x128xf32>
    tpu.vector_store %arg7[%c0_17, %c0_18], %44 {strides = array<i32>} : memref<4x128xf32, #tpu.memory_space<vmem>>, vector<4x128xf32>,
    return
  }
  func.func @transform_0(%arg0: i32) -> (i32, i32) {
    %c0_i32 = arith.constant 0 : i32
    %c0_i32_0 = arith.constant 0 : i32
    return %arg0, %c0_i32 : i32, i32
  }
  func.func @transform_1(%arg0: i32) -> (i32, i32) {
    %c0_i32 = arith.constant 0 : i32
    %c0_i32_0 = arith.constant 0 : i32
    return %arg0, %c0_i32 : i32, i32
  }
  func.func @transform_2(%arg0: i32) -> (i32, i32) {
    %c0_i32 = arith.constant 0 : i32
    %c0_i32_0 = arith.constant 0 : i32
    %c0_i32_1 = arith.constant 0 : i32
    return %c0_i32, %c0_i32_0 : i32, i32
  }
  func.func @transform_3(%arg0: i32) -> (i32, i32) {
    %c0_i32 = arith.constant 0 : i32
    %c0_i32_0 = arith.constant 0 : i32
    %c0_i32_1 = arith.constant 0 : i32
    return %c0_i32, %c0_i32_0 : i32, i32
  }
  func.func @transform_4(%arg0: i32) -> (i32, i32) {
    %c0_i32 = arith.constant 0 : i32
    %c0_i32_0 = arith.constant 0 : i32
    %c0_i32_1 = arith.constant 0 : i32
    return %c0_i32, %c0_i32_0 : i32, i32
  }
  func.func @transform_5(%arg0: i32) -> (i32, i32) {
    %c0_i32 = arith.constant 0 : i32
    %c0_i32_0 = arith.constant 0 : i32
    %c0_i32_1 = arith.constant 0 : i32
    return %c0_i32, %c0_i32_0 : i32, i32
  }
  func.func @transform_6(%arg0: i32) -> (i32, i32) {
    %c0_i32 = arith.constant 0 : i32
    %c0_i32_0 = arith.constant 0 : i32
    return %arg0, %c0_i32 : i32, i32
  }
}

</mosaic_0001>

<llo_original>
// kernel: tpu_custom_call.1
$region0: #{tpu_custom_call.1}
  #allocation0 [shape = 'u32[]', space=smem, size = 0x4, offset = 0x4, fixed_abs, tag = 'smem constant byte address 0x4 - core index']
  #allocation1 [shape = 'u32[72,128]{1,0:T(1,128)}', space=vmem, size = 0x9000, scoped, tag = 'internal scratch']
  %s0 = inlined_call_operand.hbm [shape: f32[4,128], index: 0, kind: input, shape index: {}]
  %s1 = inlined_call_operand.hbm [shape: f32[4,128], index: 1, kind: input, shape index: {}]
  %s2 = inlined_call_operand.hbm [shape: bf16[256,256], index: 2, kind: input, shape index: {}]
  %s3 = inlined_call_operand.hbm [shape: bf16[256,256], index: 3, kind: input, shape index: {}]
  %s4 = inlined_call_operand.vmem [shape: f32[1,128], index: 4, kind: input, shape index: {}]
  %s5 = inlined_call_operand.vmem [shape: f32[1,128], index: 5, kind: input, shape index: {}]
  %s6 = inlined_call_operand.hbm [shape: f32[4,128], index: 6, kind: output, shape index: {}]
  %s7 = sld [smem:[#allocation0]]
  $region50: #{tpu_custom_call.1} parent=0
    _
  %s9 = ssub.s32 1, %s7
  %s10 = scalar_select 0, %s9, %s7
  $region1: #{tpu_custom_call.1} parent=0
    #allocation2 [shape = 'u8[2048]{0}', space=vmem, size = 0x800, scoped, tag = 'input window, operand 0, single buffered']
    #allocation3 [shape = 's32[1]{0}', space=sflag, size = 0x4, scoped, tag = 'scoped memory for tpu_custom_call.1']
    #allocation4 [shape = 's32[1]{0}', space=sflag, size = 0x4, scoped, tag = 'scoped memory for tpu_custom_call.1']
    #allocation5 [shape = 'u8[2048]{0}', space=vmem, size = 0x800, scoped, tag = 'input window, operand 1, single buffered']
    #allocation6 [shape = 's32[1]{0}', space=sflag, size = 0x4, scoped, tag = 'scoped memory for tpu_custom_call.1']
    #allocation7 [shape = 'u8[131072]{0}', space=vmem, size = 0x20000, scoped, tag = 'input window, operand 2, single buffered']
    #allocation8 [shape = 'u8[131072]{0}', space=vmem, size = 0x20000, scoped, tag = 'input window, operand 3, single buffered']
    #allocation9 [shape = 's32[1]{0}', space=sflag, size = 0x4, scoped, tag = 'scoped memory for tpu_custom_call.1']
    #allocation10 [shape = 'u8[2048]{0}', space=vmem, size = 0x800, scoped, tag = 'output window, operand 0, single buffered']
    %11 = vsyncpa [#allocation3], 0
    %12 = vsyncpa [#allocation6], 0
    %13 = vsyncpa [#allocation9], 0
    %14 = vsyncpa [#allocation4], 0
    // Predicated region
    $region2: #{tpu_custom_call.1} parent=1 // pred_check
      _
    $region3: #{tpu_custom_call.1} parent=1 // pred_check_branch
      %16 = sbr.rel (0) target = $region5
    $region4: #{tpu_custom_call.1} parent=1 // pred_region
      %18 = vsyncadd [#allocation3], 0
      %s20 = sshll.u32 %s0, 4
      %s21 = int_to_ptr.hbm [resolvable:$true] %s20
      %s22 = sshll.u32 [#allocation2], 4
      %s23 = int_to_ptr.vmem [resolvable:$true] %s22
      %25 = dma.hbm_to_vmem [thread:$0]  %s21, 64, %s23, [#allocation3]
    $region5: #{tpu_custom_call.1} parent=1 // pred_fallthru
      _
    // Predicated region
    $region6: #{tpu_custom_call.1} parent=1 // pred_check
      _
    $region7: #{tpu_custom_call.1} parent=1 // pred_check_branch
      %27 = sbr.rel (0) target = $region9
    $region8: #{tpu_custom_call.1} parent=1 // pred_region
      %29 = vsyncadd [#allocation6], 0
      %s31 = sshll.u32 %s1, 4
      %s32 = int_to_ptr.hbm [resolvable:$true] %s31
      %s33 = sshll.u32 [#allocation5], 4
      %s34 = int_to_ptr.vmem [resolvable:$true] %s33
      %36 = dma.hbm_to_vmem [thread:$0]  %s32, 64, %s34, [#allocation6]
    $region9: #{tpu_custom_call.1} parent=1 // pred_fallthru
      _
    // Predicated region
    $region10: #{tpu_custom_call.1} parent=1 // pred_check
      _
    $region11: #{tpu_custom_call.1} parent=1 // pred_check_branch
      %38 = sbr.rel (0) target = $region13
    $region12: #{tpu_custom_call.1} parent=1 // pred_region
      %40 = vsyncadd [#allocation6], 0
      %s41 = sshll.u32 %s2, 4
      %s42 = int_to_ptr.hbm [resolvable:$true] %s41
      %s43 = sshll.u32 [#allocation7], 4
      %s44 = int_to_ptr.vmem [resolvable:$true] %s43
      %49 = dma.hbm_to_vmem [thread:$0]  %s42, 4096, %s44, [#allocation6], 128, 128, 8
    $region13: #{tpu_custom_call.1} parent=1 // pred_fallthru
      _
    // Predicated region
    $region14: #{tpu_custom_call.1} parent=1 // pred_check
      _
    $region15: #{tpu_custom_call.1} parent=1 // pred_check_branch
      %51 = sbr.rel (0) target = $region17
    $region16: #{tpu_custom_call.1} parent=1 // pred_region
      %53 = vsyncadd [#allocation9], 0
      %s54 = sshll.u32 %s3, 4
      %s55 = int_to_ptr.hbm [resolvable:$true] %s54
      %s56 = sshll.u32 [#allocation8], 4
      %s57 = int_to_ptr.vmem [resolvable:$true] %s56
      %62 = dma.hbm_to_vmem [thread:$0]  %s55, 4096, %s57, [#allocation9], 128, 128, 8
    $region17: #{tpu_custom_call.1} parent=1 // pred_fallthru
      _
    // Predicated region
    $region18: #{tpu_custom_call.1} parent=1 // pred_check
      _
    $region19: #{tpu_custom_call.1} parent=1 // pred_check_branch
      %64 = sbr.rel (0) target = $region21
    $region20: #{tpu_custom_call.1} parent=1 // pred_region
      _
    $region21: #{tpu_custom_call.1} parent=1 // pred_fallthru
      _
    // Predicated region
    $region22: #{tpu_custom_call.1} parent=1 // pred_check
      _
    $region23: #{tpu_custom_call.1} parent=1 // pred_check_branch
      %66 = sbr.rel (0) target = $region25
    $region24: #{tpu_custom_call.1} parent=1 // pred_region
      _
    $region25: #{tpu_custom_call.1} parent=1 // pred_fallthru
      _
    // Predicated region
    $region26: #{tpu_custom_call.1} parent=1 // pred_check
      _
    $region27: #{tpu_custom_call.1} parent=1 // pred_check_branch
      %68 = sbr.rel (0) target = $region29
    $region28: #{tpu_custom_call.1} parent=1 // pred_region
      %70 = dma.done [#allocation3], 64
    $region29: #{tpu_custom_call.1} parent=1 // pred_fallthru
      _
    // Predicated region
    $region30: #{tpu_custom_call.1} parent=1 // pred_check
      _
    $region31: #{tpu_custom_call.1} parent=1 // pred_check_branch
      %72 = sbr.rel (0) target = $region33
    $region32: #{tpu_custom_call.1} parent=1 // pred_region
      %74 = dma.done [#allocation6], 64
    $region33: #{tpu_custom_call.1} parent=1 // pred_fallthru
      _
    // Predicated region
    $region34: #{tpu_custom_call.1} parent=1 // pred_check
      _
    $region35: #{tpu_custom_call.1} parent=1 // pred_check_branch
      %76 = sbr.rel (0) target = $region37
    $region36: #{tpu_custom_call.1} parent=1 // pred_region
      %78 = dma.done [#allocation6], 4096
    $region37: #{tpu_custom_call.1} parent=1 // pred_fallthru
      _
    // Predicated region
    $region38: #{tpu_custom_call.1} parent=1 // pred_check
      _
    $region39: #{tpu_custom_call.1} parent=1 // pred_check_branch
      %80 = sbr.rel (0) target = $region41
    $region40: #{tpu_custom_call.1} parent=1 // pred_region
      %82 = dma.done [#allocation9], 4096
    $region41: #{tpu_custom_call.1} parent=1 // pred_fallthru
      _
    %v83 = vld [vmem:[#allocation2] sm:$0xf]
    %v84 = vld [vmem:[#allocation5] sm:$0xf]
    %v85 = vpack.c.bf16 %v84, %v84
    %v86 = vunpack.c.l.bf16 %v85
    %v87 = vmul.f32 %v86, %v86
    %v88 = vpack.c.bf16 %v87, %v87
    %v89 = vld [vmem:[#allocation7] sm:$0xff]
    %v90 = vld [vmem:[#allocation7 + $0x8] sm:$0xff]
    %v91 = vld [vmem:[#allocation7 + $0x10] sm:$0xff]
    %v92 = vld [vmem:[#allocation7 + $0x18] sm:$0xff]
    %v93 = vld [vmem:[#allocation7 + $0x20] sm:$0xff]
    %v94 = vld [vmem:[#allocation7 + $0x28] sm:$0xff]
    %v95 = vld [vmem:[#allocation7 + $0x30] sm:$0xff]
    %v96 = vld [vmem:[#allocation7 + $0x38] sm:$0xff]
    %v97 = vld [vmem:[#allocation7 + $0x40] sm:$0xff]
    %v98 = vld [vmem:[#allocation7 + $0x48] sm:$0xff]
    %v99 = vld [vmem:[#allocation7 + $0x50] sm:$0xff]
    %v100 = vld [vmem:[#allocation7 + $0x58] sm:$0xff]
    %v101 = vld [vmem:[#allocation7 + $0x60] sm:$0xff]
    %v102 = vld [vmem:[#allocation7 + $0x68] sm:$0xff]
    %v103 = vld [vmem:[#allocation7 + $0x70] sm:$0xff]
    %v104 = vld [vmem:[#allocation7 + $0x78] sm:$0xff]
    %v105 = vld [vmem:[#allocation7 + $0x80] sm:$0xff]
    %v106 = vld [vmem:[#allocation7 + $0x88] sm:$0xff]
    %v107 = vld [vmem:[#allocation7 + $0x90] sm:$0xff]
    %v108 = vld [vmem:[#allocation7 + $0x98] sm:$0xff]
    %v109 = vld [vmem:[#allocation7 + $0xa0] sm:$0xff]
    %v110 = vld [vmem:[#allocation7 + $0xa8] sm:$0xff]
    %v111 = vld [vmem:[#allocation7 + $0xb0] sm:$0xff]
    %v112 = vld [vmem:[#allocation7 + $0xb8] sm:$0xff]
    %v113 = vld [vmem:[#allocation7 + $0xc0] sm:$0xff]
    %v114 = vld [vmem:[#allocation7 + $0xc8] sm:$0xff]
    %v115 = vld [vmem:[#allocation7 + $0xd0] sm:$0xff]
    %v116 = vld [vmem:[#allocation7 + $0xd8] sm:$0xff]
    %v117 = vld [vmem:[#allocation7 + $0xe0] sm:$0xff]
    %v118 = vld [vmem:[#allocation7 + $0xe8] sm:$0xff]
    %v119 = vld [vmem:[#allocation7 + $0xf0] sm:$0xff]
    %v120 = vld [vmem:[#allocation7 + $0xf8] sm:$0xff]
    %v153 = vunpack.c.l.b16 %v89
    %v154 = vunpack.c.h.b16 %v89
    %v155 = vunpack.c.l.b16 %v90
    %v156 = vunpack.c.h.b16 %v90
    %v157 = vunpack.c.l.b16 %v91
    %v158 = vunpack.c.h.b16 %v91
    %v159 = vunpack.c.l.b16 %v92
    %v160 = vunpack.c.h.b16 %v92
    %v161 = vunpack.c.l.b16 %v93
    %v162 = vunpack.c.h.b16 %v93
    %v163 = vunpack.c.l.b16 %v94
    %v164 = vunpack.c.h.b16 %v94
    %v165 = vunpack.c.l.b16 %v95
    %v166 = vunpack.c.h.b16 %v95
    %v167 = vunpack.c.l.b16 %v96
    %v168 = vunpack.c.h.b16 %v96
    %v169 = vunpack.c.l.b16 %v97
    %v170 = vunpack.c.h.b16 %v97
    %v171 = vunpack.c.l.b16 %v98
    %v172 = vunpack.c.h.b16 %v98
    %v173 = vunpack.c.l.b16 %v99
    %v174 = vunpack.c.h.b16 %v99
    %v175 = vunpack.c.l.b16 %v100
    %v176 = vunpack.c.h.b16 %v100
    %v177 = vunpack.c.l.b16 %v101
    %v178 = vunpack.c.h.b16 %v101
    %v179 = vunpack.c.l.b16 %v102
    %v180 = vunpack.c.h.b16 %v102
    %v181 = vunpack.c.l.b16 %v103
    %v182 = vunpack.c.h.b16 %v103
    %v183 = vunpack.c.l.b16 %v104
    %v184 = vunpack.c.h.b16 %v104
    %v185 = vunpack.c.l.b16 %v105
    %v186 = vunpack.c.h.b16 %v105
    %v187 = vunpack.c.l.b16 %v106
    %v188 = vunpack.c.h.b16 %v106
    %v189 = vunpack.c.l.b16 %v107
    %v190 = vunpack.c.h.b16 %v107
    %v191 = vunpack.c.l.b16 %v108
    %v192 = vunpack.c.h.b16 %v108
    %v193 = vunpack.c.l.b16 %v109
    %v194 = vunpack.c.h.b16 %v109
    %v195 = vunpack.c.l.b16 %v110
    %v196 = vunpack.c.h.b16 %v110
    %v197 = vunpack.c.l.b16 %v111
    %v198 = vunpack.c.h.b16 %v111
    %v199 = vunpack.c.l.b16 %v112
    %v200 = vunpack.c.h.b16 %v112
    %v201 = vunpack.c.l.b16 %v113
    %v202 = vunpack.c.h.b16 %v113
    %v203 = vunpack.c.l.b16 %v114
    %v204 = vunpack.c.h.b16 %v114
    %v205 = vunpack.c.l.b16 %v115
    %v206 = vunpack.c.h.b16 %v115
    %v207 = vunpack.c.l.b16 %v116
    %v208 = vunpack.c.h.b16 %v116
    %v209 = vunpack.c.l.b16 %v117
    %v210 = vunpack.c.h.b16 %v117
    %v211 = vunpack.c.l.b16 %v118
    %v212 = vunpack.c.h.b16 %v118
    %v213 = vunpack.c.l.b16 %v119
    %v214 = vunpack.c.h.b16 %v119
    %v215 = vunpack.c.l.b16 %v120
    %v216 = vunpack.c.h.b16 %v120
    %v217 = vpack.c.b16 %v155, %v153
    %v218 = vpack.c.b16 %v156, %v154
    %v219 = vpack.c.b16 %v159, %v157
    %v220 = vpack.c.b16 %v160, %v158
    %v221 = vpack.c.b16 %v163, %v161
    %v222 = vpack.c.b16 %v164, %v162
    %v223 = vpack.c.b16 %v167, %v165
    %v224 = vpack.c.b16 %v168, %v166
    %v225 = vpack.c.b16 %v171, %v169
    %v226 = vpack.c.b16 %v172, %v170
    %v227 = vpack.c.b16 %v175, %v173
    %v228 = vpack.c.b16 %v176, %v174
    %v229 = vpack.c.b16 %v179, %v177
    %v230 = vpack.c.b16 %v180, %v178
    %v231 = vpack.c.b16 %v183, %v181
    %v232 = vpack.c.b16 %v184, %v182
    %v233 = vpack.c.b16 %v187, %v185
    %v234 = vpack.c.b16 %v188, %v186
    %v235 = vpack.c.b16 %v191, %v189
    %v236 = vpack.c.b16 %v192, %v190
    %v237 = vpack.c.b16 %v195, %v193
    %v238 = vpack.c.b16 %v196, %v194
    %v239 = vpack.c.b16 %v199, %v197
    %v240 = vpack.c.b16 %v200, %v198
    %v241 = vpack.c.b16 %v203, %v201
    %v242 = vpack.c.b16 %v204, %v202
    %v243 = vpack.c.b16 %v207, %v205
    %v244 = vpack.c.b16 %v208, %v206
    %v245 = vpack.c.b16 %v211, %v209
    %v246 = vpack.c.b16 %v212, %v210
    %v247 = vpack.c.b16 %v215, %v213
    %v248 = vpack.c.b16 %v216, %v214
    %281 = vmatpush.bf16.msra.mxu0 %v231
    %282 = vmatpush.bf16.msra.mxu0 %v229
    %283 = vmatpush.bf16.msra.mxu0 %v227
    %284 = vmatpush.bf16.msra.mxu0 %v225
    %285 = vmatpush.bf16.msra.mxu0 %v223
    %286 = vmatpush.bf16.msra.mxu0 %v221
    %287 = vmatpush.bf16.msra.mxu0 %v219
    %288 = vmatpush.bf16.msra.mxu0 %v217
    %289 = vmatmul.bf16.gmra.mxu0 %v85
    %v290 = vpop.f32.mrf.mxu0
    %v291 = vadd.f32 0.0, %v290
    %v292 = vpop.f32.mrf.mxu0
    %293 = vdwg.mxu0
    %294 = vmatpush.bf16.msra.mxu0 %v247
    %295 = vmatpush.bf16.msra.mxu0 %v245
    %296 = vmatpush.bf16.msra.mxu0 %v243
    %297 = vmatpush.bf16.msra.mxu0 %v241
    %298 = vmatpush.bf16.msra.mxu0 %v239
    %299 = vmatpush.bf16.msra.mxu0 %v237
    %300 = vmatpush.bf16.msra.mxu0 %v235
    %301 = vmatpush.bf16.msra.mxu0 %v233
    %302 = vmatmul.bf16.gmra.mxu0 %v88
    %v303 = vpop.f32.mrf.mxu0
    %v304 = vadd.f32 %v291, %v303
    %v305 = vpop.f32.mrf.mxu0
    %306 = vdwg.mxu0
    %307 = vmatpush.bf16.msra.mxu0 %v232
    %308 = vmatpush.bf16.msra.mxu0 %v230
    %309 = vmatpush.bf16.msra.mxu0 %v228
    %310 = vmatpush.bf16.msra.mxu0 %v226
    %311 = vmatpush.bf16.msra.mxu0 %v224
    %312 = vmatpush.bf16.msra.mxu0 %v222
    %313 = vmatpush.bf16.msra.mxu0 %v220
    %314 = vmatpush.bf16.msra.mxu0 %v218
    %315 = vmatmul.bf16.gmra.mxu0 %v85
    %v316 = vpop.f32.mrf.mxu0
    %v317 = vadd.f32 0.0, %v316
    %v318 = vpop.f32.mrf.mxu0
    %319 = vdwg.mxu0
    %320 = vmatpush.bf16.msra.mxu0 %v248
    %321 = vmatpush.bf16.msra.mxu0 %v246
    %322 = vmatpush.bf16.msra.mxu0 %v244
    %323 = vmatpush.bf16.msra.mxu0 %v242
    %324 = vmatpush.bf16.msra.mxu0 %v240
    %325 = vmatpush.bf16.msra.mxu0 %v238
    %326 = vmatpush.bf16.msra.mxu0 %v236
    %327 = vmatpush.bf16.msra.mxu0 %v234
    %328 = vmatmul.bf16.gmra.mxu0 %v88
    %v329 = vpop.f32.mrf.mxu0
    %v330 = vadd.f32 %v317, %v329
    %v331 = vpop.f32.mrf.mxu0
    %332 = vdwg.mxu0
    %v333 = vmul.f32 %v304, %v304
    %v334 = vsub.f32 %v330, %v333
    %v335 = vadd.f32 %v334, 1e-05
    %v336 = vrsqrt.pop %v335
    %v337 = vmul.f32 %v336, %v335
    %v338 = vmul.f32 %v337, %v336
    %v339 = vmul.f32 0.5, %v338
    %v340 = vsub.f32 1.5, %v339
    %v341 = vmul.f32 %v336, %v340
    %vm342 = vweird.f32 %v335
    %vm343 = vweird.f32 %v336
    %vm344 = vmor %vm342, %vm343
    %v345 = vsel %vm344, %v336, %v341
    %v346 = vsub.f32 %v84, %v304
    %v347 = vmul.f32 %v346, %v345
    %v348 = vld [vmem:[%s4] sm:$0x1]
    %v350 = vperm.slane %v348, 0
    %v352 = vmul.f32 %v347, %v350
    %v353 = vld [vmem:[%s5] sm:$0x1]
    %v355 = vperm.slane %v353, 0
    %v357 = vadd.f32 %v352, %v355
    %v358 = vpack.c.bf16 %v83, %v83
    %v359 = vpack.c.bf16 %v357, %v357
    %v360 = vld [vmem:[#allocation8] sm:$0xff]
    %v361 = vld [vmem:[#allocation8 + $0x8] sm:$0xff]
    %v362 = vld [vmem:[#allocation8 + $0x10] sm:$0xff]
    %v363 = vld [vmem:[#allocation8 + $0x18] sm:$0xff]
    %v364 = vld [vmem:[#allocation8 + $0x20] sm:$0xff]
    %v365 = vld [vmem:[#allocation8 + $0x28] sm:$0xff]
    %v366 = vld [vmem:[#allocation8 + $0x30] sm:$0xff]
    %v367 = vld [vmem:[#allocation8 + $0x38] sm:$0xff]
    %v368 = vld [vmem:[#allocation8 + $0x40] sm:$0xff]
    %v369 = vld [vmem:[#allocation8 + $0x48] sm:$0xff]
    %v370 = vld [vmem:[#allocation8 + $0x50] sm:$0xff]
    %v371 = vld [vmem:[#allocation8 + $0x58] sm:$0xff]
    %v372 = vld [vmem:[#allocation8 + $0x60] sm:$0xff]
    %v373 = vld [vmem:[#allocation8 + $0x68] sm:$0xff]
    %v374 = vld [vmem:[#allocation8 + $0x70] sm:$0xff]
    %v375 = vld [vmem:[#allocation8 + $0x78] sm:$0xff]
    %v376 = vld [vmem:[#allocation8 + $0x80] sm:$0xff]
    %v377 = vld [vmem:[#allocation8 + $0x88] sm:$0xff]
    %v378 = vld [vmem:[#allocation8 + $0x90] sm:$0xff]
    %v379 = vld [vmem:[#allocation8 + $0x98] sm:$0xff]
    %v380 = vld [vmem:[#allocation8 + $0xa0] sm:$0xff]
    %v381 = vld [vmem:[#allocation8 + $0xa8] sm:$0xff]
    %v382 = vld [vmem:[#allocation8 + $0xb0] sm:$0xff]
    %v383 = vld [vmem:[#allocation8 + $0xb8] sm:$0xff]
    %v384 = vld [vmem:[#allocation8 + $0xc0] sm:$0xff]
    %v385 = vld [vmem:[#allocation8 + $0xc8] sm:$0xff]
    %v386 = vld [vmem:[#allocation8 + $0xd0] sm:$0xff]
    %v387 = vld [vmem:[#allocation8 + $0xd8] sm:$0xff]
    %v388 = vld [vmem:[#allocation8 + $0xe0] sm:$0xff]
    %v389 = vld [vmem:[#allocation8 + $0xe8] sm:$0xff]
    %v390 = vld [vmem:[#allocation8 + $0xf0] sm:$0xff]
    %v391 = vld [vmem:[#allocation8 + $0xf8] sm:$0xff]
    %v424 = vunpack.c.l.b16 %v360
    %v425 = vunpack.c.h.b16 %v360
    %v426 = vunpack.c.l.b16 %v361
    %v427 = vunpack.c.h.b16 %v361
    %v428 = vunpack.c.l.b16 %v362
    %v429 = vunpack.c.h.b16 %v362
    %v430 = vunpack.c.l.b16 %v363
    %v431 = vunpack.c.h.b16 %v363
    %v432 = vunpack.c.l.b16 %v364
    %v433 = vunpack.c.h.b16 %v364
    %v434 = vunpack.c.l.b16 %v365
    %v435 = vunpack.c.h.b16 %v365
    %v436 = vunpack.c.l.b16 %v366
    %v437 = vunpack.c.h.b16 %v366
    %v438 = vunpack.c.l.b16 %v367
    %v439 = vunpack.c.h.b16 %v367
    %v440 = vunpack.c.l.b16 %v368
    %v441 = vunpack.c.h.b16 %v368
    %v442 = vunpack.c.l.b16 %v369
    %v443 = vunpack.c.h.b16 %v369
    %v444 = vunpack.c.l.b16 %v370
    %v445 = vunpack.c.h.b16 %v370
    %v446 = vunpack.c.l.b16 %v371
    %v447 = vunpack.c.h.b16 %v371
    %v448 = vunpack.c.l.b16 %v372
    %v449 = vunpack.c.h.b16 %v372
    %v450 = vunpack.c.l.b16 %v373
    %v451 = vunpack.c.h.b16 %v373
    %v452 = vunpack.c.l.b16 %v374
    %v453 = vunpack.c.h.b16 %v374
    %v454 = vunpack.c.l.b16 %v375
    %v455 = vunpack.c.h.b16 %v375
    %v456 = vunpack.c.l.b16 %v376
    %v457 = vunpack.c.h.b16 %v376
    %v458 = vunpack.c.l.b16 %v377
    %v459 = vunpack.c.h.b16 %v377
    %v460 = vunpack.c.l.b16 %v378
    %v461 = vunpack.c.h.b16 %v378
    %v462 = vunpack.c.l.b16 %v379
    %v463 = vunpack.c.h.b16 %v379
    %v464 = vunpack.c.l.b16 %v380
    %v465 = vunpack.c.h.b16 %v380
    %v466 = vunpack.c.l.b16 %v381
    %v467 = vunpack.c.h.b16 %v381
    %v468 = vunpack.c.l.b16 %v382
    %v469 = vunpack.c.h.b16 %v382
    %v470 = vunpack.c.l.b16 %v383
    %v471 = vunpack.c.h.b16 %v383
    %v472 = vunpack.c.l.b16 %v384
    %v473 = vunpack.c.h.b16 %v384
    %v474 = vunpack.c.l.b16 %v385
    %v475 = vunpack.c.h.b16 %v385
    %v476 = vunpack.c.l.b16 %v386
    %v477 = vunpack.c.h.b16 %v386
    %v478 = vunpack.c.l.b16 %v387
    %v479 = vunpack.c.h.b16 %v387
    %v480 = vunpack.c.l.b16 %v388
    %v481 = vunpack.c.h.b16 %v388
    %v482 = vunpack.c.l.b16 %v389
    %v483 = vunpack.c.h.b16 %v389
    %v484 = vunpack.c.l.b16 %v390
    %v485 = vunpack.c.h.b16 %v390
    %v486 = vunpack.c.l.b16 %v391
    %v487 = vunpack.c.h.b16 %v391
    %v488 = vpack.c.b16 %v426, %v424
    %v489 = vpack.c.b16 %v427, %v425
    %v490 = vpack.c.b16 %v430, %v428
    %v491 = vpack.c.b16 %v431, %v429
    %v492 = vpack.c.b16 %v434, %v432
    %v493 = vpack.c.b16 %v435, %v433
    %v494 = vpack.c.b16 %v438, %v436
    %v495 = vpack.c.b16 %v439, %v437
    %v496 = vpack.c.b16 %v442, %v440
    %v497 = vpack.c.b16 %v443, %v441
    %v498 = vpack.c.b16 %v446, %v444
    %v499 = vpack.c.b16 %v447, %v445
    %v500 = vpack.c.b16 %v450, %v448
    %v501 = vpack.c.b16 %v451, %v449
    %v502 = vpack.c.b16 %v454, %v452
    %v503 = vpack.c.b16 %v455, %v453
    %v504 = vpack.c.b16 %v458, %v456
    %v505 = vpack.c.b16 %v459, %v457
    %v506 = vpack.c.b16 %v462, %v460
    %v507 = vpack.c.b16 %v463, %v461
    %v508 = vpack.c.b16 %v466, %v464
    %v509 = vpack.c.b16 %v467, %v465
    %v510 = vpack.c.b16 %v470, %v468
    %v511 = vpack.c.b16 %v471, %v469
    %v512 = vpack.c.b16 %v474, %v472
    %v513 = vpack.c.b16 %v475, %v473
    %v514 = vpack.c.b16 %v478, %v476
    %v515 = vpack.c.b16 %v479, %v477
    %v516 = vpack.c.b16 %v482, %v480
    %v517 = vpack.c.b16 %v483, %v481
    %v518 = vpack.c.b16 %v486, %v484
    %v519 = vpack.c.b16 %v487, %v485
    %552 = vmatpush.bf16.msra.mxu0 %v502
    %553 = vmatpush.bf16.msra.mxu0 %v500
    %554 = vmatpush.bf16.msra.mxu0 %v498
    %555 = vmatpush.bf16.msra.mxu0 %v496
    %556 = vmatpush.bf16.msra.mxu0 %v494
    %557 = vmatpush.bf16.msra.mxu0 %v492
    %558 = vmatpush.bf16.msra.mxu0 %v490
    %559 = vmatpush.bf16.msra.mxu0 %v488
    %560 = vmatmul.bf16.gmra.mxu0 %v358
    %v561 = vpop.f32.mrf.mxu0
    %v562 = vadd.f32 0.0, %v561
    %v563 = vpop.f32.mrf.mxu0
    %564 = vdwg.mxu0
    %565 = vmatpush.bf16.msra.mxu0 %v518
    %566 = vmatpush.bf16.msra.mxu0 %v516
    %567 = vmatpush.bf16.msra.mxu0 %v514
    %568 = vmatpush.bf16.msra.mxu0 %v512
    %569 = vmatpush.bf16.msra.mxu0 %v510
    %570 = vmatpush.bf16.msra.mxu0 %v508
    %571 = vmatpush.bf16.msra.mxu0 %v506
    %572 = vmatpush.bf16.msra.mxu0 %v504
    %573 = vmatmul.bf16.gmra.mxu0 %v359
    %v574 = vpop.f32.mrf.mxu0
    %v575 = vadd.f32 %v562, %v574
    %v576 = vpop.f32.mrf.mxu0
    %577 = vdwg.mxu0
    %578 = vmatpush.bf16.msra.mxu0 %v503
    %579 = vmatpush.bf16.msra.mxu0 %v501
    %580 = vmatpush.bf16.msra.mxu0 %v499
    %581 = vmatpush.bf16.msra.mxu0 %v497
    %582 = vmatpush.bf16.msra.mxu0 %v495
    %583 = vmatpush.bf16.msra.mxu0 %v493
    %584 = vmatpush.bf16.msra.mxu0 %v491
    %585 = vmatpush.bf16.msra.mxu0 %v489
    %586 = vmatmul.bf16.gmra.mxu0 %v358
    %v587 = vpop.f32.mrf.mxu0
    %v588 = vadd.f32 0.0, %v587
    %v589 = vpop.f32.mrf.mxu0
    %590 = vdwg.mxu0
    %591 = vmatpush.bf16.msra.mxu0 %v519
    %592 = vmatpush.bf16.msra.mxu0 %v517
    %593 = vmatpush.bf16.msra.mxu0 %v515
    %594 = vmatpush.bf16.msra.mxu0 %v513
    %595 = vmatpush.bf16.msra.mxu0 %v511
    %596 = vmatpush.bf16.msra.mxu0 %v509
    %597 = vmatpush.bf16.msra.mxu0 %v507
    %598 = vmatpush.bf16.msra.mxu0 %v505
    %599 = vmatmul.bf16.gmra.mxu0 %v359
    %v600 = vpop.f32.mrf.mxu0
    %v601 = vadd.f32 %v588, %v600
    %v602 = vpop.f32.mrf.mxu0
    %603 = vdwg.mxu0
    %v604 = vsub.f32 0.0, %v575
    %v605 = vmul.f32 %v604, 1.442695
    %v606 = vpow.pop %v605
    %v607 = vadd.f32 %v606, 1.0
    %v608 = vrcp.pop %v607
    %v609 = vsub.f32 0.0, %v601
    %v610 = vmul.f32 %v609, 1.442695
    %v611 = vpow.pop %v610
    %v612 = vadd.f32 %v611, 1.0
    %v613 = vrcp.pop %v612
    %v614 = vmul.f32 %v608, %v83
    %v615 = vmul.f32 %v613, %v357
    %v616 = vadd.f32 %v614, %v615
    %v617 = vadd.f32 %v616, %v83
    %618 = vst [vmem:[#allocation10] sm:$0xf] %v617
    // Predicated region
    $region42: #{tpu_custom_call.1} parent=1 // pred_check
      _
    $region43: #{tpu_custom_call.1} parent=1 // pred_check_branch
      %620 = sbr.rel (0) target = $region45
    $region44: #{tpu_custom_call.1} parent=1 // pred_region
      %622 = vsyncadd [#allocation4], 0
      %s624 = sshll.u32 [#allocation10], 4
      %s625 = int_to_ptr.vmem [resolvable:$true] %s624
      %s626 = sshll.u32 %s6, 4
      %s627 = int_to_ptr.hbm [resolvable:$true] %s626
      %629 = dma.vmem_to_hbm [thread:$0]  %s625, 64, %s627, [#allocation4]
    $region45: #{tpu_custom_call.1} parent=1 // pred_fallthru
      _
    // Predicated region
    $region46: #{tpu_custom_call.1} parent=1 // pred_check
      _
    $region47: #{tpu_custom_call.1} parent=1 // pred_check_branch
      %631 = sbr.rel (0) target = $region49
    $region48: #{tpu_custom_call.1} parent=1 // pred_region
      %633 = dma.done [#allocation4], 64
    $region49: #{tpu_custom_call.1} parent=1 // pred_fallthru
      _
    %634 = vsyncpa [#allocation3], 1
    %635 = vsyncpa [#allocation6], 1
    %636 = vsyncpa [#allocation9], 1
    %637 = vsyncpa [#allocation4], 1

</llo_original>
